<compile_context>
chip_gen: v5e
topology: v5e:2x2
jax: 0.10.0
libtpu: 0.0.40
codegen_flags: <defaults>
</compile_context>

<pallas_src>
import functools

import numpy as np
import jax
import jax.numpy as jnp
from jax.experimental import pallas as pl
from jax.experimental.pallas import tpu as pltpu


def _max_filter_kernel(coords_ref, x_ref, o_ref, *, W, H, D, delta):
    """coords_ref: (3, L) int32 rows = (w, h, d) of each lane (-1 in padded tail lanes).
    x_ref / o_ref: (R, L) blocks, L = D*H*W rounded up to a multiple of 128."""
    x = x_ref[...]                                # (R, L)
    L = x.shape[1]
    wc = coords_ref[0:1, :]                       # (1, L) destination-lane coordinates
    hc = coords_ref[1:2, :]
    dc = coords_ref[2:3, :]
    neg = jnp.asarray(-jnp.inf, dtype=x.dtype)

    def axis_pass(v, step, c, extent):
        # Running max over the (2*delta+1) window along one spatial axis.
        #   roll(v, +k)[p] = v[p-k] -> neighbour at coord c-s, exists iff c >= s
        #   roll(v, -k)[p] = v[p+k] -> neighbour at coord c+s, exists iff c <= extent-1-s
        # A single coordinate-vs-scalar test per shift is enough: it excludes padded
        # tail lanes (coord == -1) and all wrap-around sources for real lanes.
        # TODO(synk): for delta >= 3 switch to a log2 doubled-shift cascade
        # (van Herk / Gil-Werman) so per-axis cost grows O(log delta).
        m = v
        for s in range(1, delta + 1):
            fwd = (s * step) % L
            bwd = (-s * step) % L
            if fwd != 0:
                rv = pltpu.roll(v, fwd, axis=1)
                m = jnp.maximum(m, jnp.where(c >= s, rv, neg))
            if bwd != 0:
                rv = pltpu.roll(v, bwd, axis=1)
                m = jnp.maximum(m, jnp.where(c <= extent - 1 - s, rv, neg))
        return m

    m = axis_pass(x, 1, wc, W)          # max over W window (stride 1)
    m = axis_pass(m, W, hc, H)          # then H (stride W)
    m = axis_pass(m, W * H, dc, D)      # then D (stride H*W; 128-aligned when H*W%128==0)

    # Faithful to the PyTorch forward: out = x * (x == max_pool(x)).float()
    # (keeps NaN propagation: NaN * 0 = NaN).
    o_ref[...] = x * (x == m).astype(x.dtype)


def max_filter_layer(x, delta=1):
    """x: (N, C, D, H, W) float array. Returns x masked to its (2*delta+1)^3 local maxima."""
    delta = int(delta)
    N, C, D, H, W = x.shape
    NC = N * C
    DHW = D * H * W

    # Lane-dense layout: collapse (D, H, W) onto the lane axis (free reshape). Pad only
    # if DHW is not already a multiple of 128 (128-friendly volumes pay nothing).
    L = ((DHW + 127) // 128) * 128
    x2 = x.reshape(NC, DHW)
    if L != DHW:
        # TODO(synk): fold this pad (and the final crop) into the kernel with masked
        # partial stores so non-128-multiple volumes don't pay an extra HBM round-trip.
        x2 = jnp.pad(x2, ((0, 0), (0, L - DHW)))

    # Per-lane (w, h, d) coordinates; -1 marks padding lanes (never a valid neighbour).
    p = np.arange(DHW, dtype=np.int64)
    coords = np.stack([p % W, (p // W) % H, p // (H * W)])
    coords = np.pad(coords, ((0, 0), (0, L - DHW)), constant_values=-1).astype(np.int32)
    coords = jnp.asarray(coords)

    # Block sizing: whole (n,c) volumes per row, ~4 MiB blocks. Sublane tile is a
    # multiple of 8 (or the full N*C extent). When N*C > 8, cap the tile below N*C so
    # the grid has >= 2 steps and both v7x TensorCores get work.
    itemsize = jnp.dtype(x.dtype).itemsize
    row_bytes = L * itemsize
    budget = 4 * 1024 * 1024
    if NC <= 8:
        nc_tile = NC                                  # full-extent sublane tile
    else:
        by_budget = max(8, (budget // row_bytes) // 8 * 8)
        lt_nc = ((NC - 1) // 8) * 8                   # largest multiple of 8 < NC (>= 8)
        nc_tile = min(by_budget, lt_nc)
    # TODO(synk): very large single volumes (one (D,H,W) row >> VMEM budget) should
    # switch to D-halo tiling instead of whole-volume rows (v7x has only 64 MiB VMEM).
    grid = (pl.cdiv(NC, nc_tile),)

    kern = functools.partial(_max_filter_kernel, W=W, H=H, D=D, delta=delta)
    out2 = pl.pallas_call(
        kern,
        out_shape=jax.ShapeDtypeStruct((NC, L), x.dtype),
        grid=grid,
        in_specs=[
            pl.BlockSpec((3, L), lambda i: (0, 0)),          # coords: fetched once, resident
            pl.BlockSpec((nc_tile, L), lambda i: (i, 0)),
        ],
        out_specs=pl.BlockSpec((nc_tile, L), lambda i: (i, 0)),
        compiler_params=pltpu.CompilerParams(
            dimension_semantics=("parallel",),
            vmem_limit_bytes=48 * 1024 * 1024,
        ),
    )(coords, x2)

    if L != DHW:
        out2 = out2[:, :DHW]
    return out2.reshape(N, C, D, H, W)


def _reference(x, delta=1):
    """Pure-JAX reference reproducing the PyTorch forward."""
    k = 2 * delta + 1
    mp = jax.lax.reduce_window(
        x,
        -jnp.inf,
        jax.lax.max,
        window_dimensions=(1, 1, k, k, k),
        window_strides=(1, 1, 1, 1, 1),
        padding=((0, 0), (0, 0), (delta, delta), (delta, delta), (delta, delta)),
    )
    return x * (x == mp).astype(x.dtype)


if __name__ == "__main__":
    key = jax.random.PRNGKey(0)

    # Main case: NCDHW = (2, 2, 6, 8, 16); D*H*W = 768 (multiple of 128, no padding).
    x = jax.random.normal(key, (2, 2, 6, 8, 16), dtype=jnp.float32)
    out = jax.block_until_ready(max_filter_layer(x, delta=1))
    ref = _reference(x, delta=1)
    assert out.shape == x.shape and out.dtype == x.dtype
    assert bool(jnp.array_equal(out, ref)), "mismatch vs reference (delta=1)"

    # delta=2 on the same volume (exercises multi-shift passes).
    out2 = jax.block_until_ready(max_filter_layer(x, delta=2))
    ref2 = _reference(x, delta=2)
    assert bool(jnp.array_equal(out2, ref2)), "mismatch vs reference (delta=2)"

    # Non-128-multiple volume (exercises padded tail lanes): D*H*W = 140 -> L = 256.
    y = jax.random.normal(jax.random.PRNGKey(1), (1, 3, 4, 5, 7), dtype=jnp.float32)
    outy = jax.block_until_ready(max_filter_layer(y, delta=1))
    refy = _reference(y, delta=1)
    assert bool(jnp.array_equal(outy, refy)), "mismatch vs reference (padded lanes)"

    print("KERNEL_OK")
</pallas_src>

<mosaic_0001>
module attributes {stable_mosaic.version = 11 : i64} {
  func.func @_max_filter_kernel(%arg0: i32, %arg1: memref<3x768xi32, #tpu.memory_space<vmem>>, %arg2: memref<4x768xf32, #tpu.memory_space<vmem>>, %arg3: memref<4x768xf32, #tpu.memory_space<vmem>>) attributes {dimension_semantics = [#tpu.dimension_semantics<parallel>], iteration_bounds = array<i64: 1>, scalar_prefetch = 0 : i64, scratch_operands = 0 : i64, tpu.core_type = #tpu.core_type<tc>, window_params = [{pipeline_mode = #tpu.pipeline_mode<synchronous>, transform_indices = @transform_0, window_bounds = array<i64: 3, 768>}, {transform_indices = @transform_1, window_bounds = array<i64: 4, 768>}, {transform_indices = @transform_2, window_bounds = array<i64: 4, 768>}]} {
    %c0 = arith.constant 0 : index
    %c0_0 = arith.constant 0 : index
    %0 = vector.load %arg2[%c0, %c0_0] : memref<4x768xf32, #tpu.memory_space<vmem>>, vector<4x768xf32>
    %c0_1 = arith.constant 0 : index
    %c0_2 = arith.constant 0 : index
    %1 = vector.load %arg1[%c0_1, %c0_2] : memref<3x768xi32, #tpu.memory_space<vmem>>, vector<1x768xi32>
    %c1 = arith.constant 1 : index
    %c0_3 = arith.constant 0 : index
    %2 = vector.load %arg1[%c1, %c0_3] : memref<3x768xi32, #tpu.memory_space<vmem>>, vector<1x768xi32>
    %c2 = arith.constant 2 : index
    %c0_4 = arith.constant 0 : index
    %3 = vector.load %arg1[%c2, %c0_4] : memref<3x768xi32, #tpu.memory_space<vmem>>, vector<1x768xi32>
    %c1_i32 = arith.constant 1 : i32
    %4 = tpu.dynamic_rotate %0 by %c1_i32 dim 1 : vector<4x768xf32>, i32 -> vector<4x768xf32>
    %c1_i32_5 = arith.constant 1 : i32
    %5 = vector.broadcast %c1_i32_5 : i32 to vector<1x768xi32>
    %6 = arith.cmpi sge, %1, %5 : vector<1x768xi32>
    %cst = arith.constant 0xFF800000 : f32
    %7 = vector.shape_cast %6 : vector<1x768xi1> to vector<1x768xi1>
    %8 = vector.broadcast %7 : vector<1x768xi1> to vector<4x768xi1>
    %9 = vector.broadcast %cst : f32 to vector<4x768xf32>
    %10 = arith.select %8, %4, %9 : vector<4x768xi1>, vector<4x768xf32>
    %11 = arith.maximumf %0, %10 : vector<4x768xf32>
    %c767_i32 = arith.constant 767 : i32
    %12 = tpu.dynamic_rotate %0 by %c767_i32 dim 1 : vector<4x768xf32>, i32 -> vector<4x768xf32>
    %c14_i32 = arith.constant 14 : i32
    %13 = vector.broadcast %c14_i32 : i32 to vector<1x768xi32>
    %14 = arith.cmpi sle, %1, %13 : vector<1x768xi32>
    %cst_6 = arith.constant 0xFF800000 : f32
    %15 = vector.shape_cast %14 : vector<1x768xi1> to vector<1x768xi1>
    %16 = vector.broadcast %15 : vector<1x768xi1> to vector<4x768xi1>
    %17 = vector.broadcast %cst_6 : f32 to vector<4x768xf32>
    %18 = arith.select %16, %12, %17 : vector<4x768xi1>, vector<4x768xf32>
    %19 = arith.maximumf %11, %18 : vector<4x768xf32>
    %c16_i32 = arith.constant 16 : i32
    %20 = tpu.dynamic_rotate %19 by %c16_i32 dim 1 : vector<4x768xf32>, i32 -> vector<4x768xf32>
    %c1_i32_7 = arith.constant 1 : i32
    %21 = vector.broadcast %c1_i32_7 : i32 to vector<1x768xi32>
    %22 = arith.cmpi sge, %2, %21 : vector<1x768xi32>
    %cst_8 = arith.constant 0xFF800000 : f32
    %23 = vector.shape_cast %22 : vector<1x768xi1> to vector<1x768xi1>
    %24 = vector.broadcast %23 : vector<1x768xi1> to vector<4x768xi1>
    %25 = vector.broadcast %cst_8 : f32 to vector<4x768xf32>
    %26 = arith.select %24, %20, %25 : vector<4x768xi1>, vector<4x768xf32>
    %27 = arith.maximumf %19, %26 : vector<4x768xf32>
    %c752_i32 = arith.constant 752 : i32
    %28 = tpu.dynamic_rotate %19 by %c752_i32 dim 1 : vector<4x768xf32>, i32 -> vector<4x768xf32>
    %c6_i32 = arith.constant 6 : i32
    %29 = vector.broadcast %c6_i32 : i32 to vector<1x768xi32>
    %30 = arith.cmpi sle, %2, %29 : vector<1x768xi32>
    %cst_9 = arith.constant 0xFF800000 : f32
    %31 = vector.shape_cast %30 : vector<1x768xi1> to vector<1x768xi1>
    %32 = vector.broadcast %31 : vector<1x768xi1> to vector<4x768xi1>
    %33 = vector.broadcast %cst_9 : f32 to vector<4x768xf32>
    %34 = arith.select %32, %28, %33 : vector<4x768xi1>, vector<4x768xf32>
    %35 = arith.maximumf %27, %34 : vector<4x768xf32>
    %c128_i32 = arith.constant 128 : i32
    %36 = tpu.dynamic_rotate %35 by %c128_i32 dim 1 : vector<4x768xf32>, i32 -> vector<4x768xf32>
    %c1_i32_10 = arith.constant 1 : i32
    %37 = vector.broadcast %c1_i32_10 : i32 to vector<1x768xi32>
    %38 = arith.cmpi sge, %3, %37 : vector<1x768xi32>
    %cst_11 = arith.constant 0xFF800000 : f32
    %39 = vector.shape_cast %38 : vector<1x768xi1> to vector<1x768xi1>
    %40 = vector.broadcast %39 : vector<1x768xi1> to vector<4x768xi1>
    %41 = vector.broadcast %cst_11 : f32 to vector<4x768xf32>
    %42 = arith.select %40, %36, %41 : vector<4x768xi1>, vector<4x768xf32>
    %43 = arith.maximumf %35, %42 : vector<4x768xf32>
    %c640_i32 = arith.constant 640 : i32
    %44 = tpu.dynamic_rotate %35 by %c640_i32 dim 1 : vector<4x768xf32>, i32 -> vector<4x768xf32>
    %c4_i32 = arith.constant 4 : i32
    %45 = vector.broadcast %c4_i32 : i32 to vector<1x768xi32>
    %46 = arith.cmpi sle, %3, %45 : vector<1x768xi32>
    %cst_12 = arith.constant 0xFF800000 : f32
    %47 = vector.shape_cast %46 : vector<1x768xi1> to vector<1x768xi1>
    %48 = vector.broadcast %47 : vector<1x768xi1> to vector<4x768xi1>
    %49 = vector.broadcast %cst_12 : f32 to vector<4x768xf32>
    %50 = arith.select %48, %44, %49 : vector<4x768xi1>, vector<4x768xf32>
    %51 = arith.maximumf %43, %50 : vector<4x768xf32>
    %52 = arith.cmpf oeq, %0, %51 : vector<4x768xf32>
    %53 = arith.extui %52 : vector<4x768xi1> to vector<4x768xi32>
    %54 = arith.sitofp %53 : vector<4x768xi32> to vector<4x768xf32>
    %55 = arith.mulf %0, %54 : vector<4x768xf32>
    %c0_13 = arith.constant 0 : index
    %c0_14 = arith.constant 0 : index
    %56 = vector.load %arg3[%c0_13, %c0_14] : memref<4x768xf32, #tpu.memory_space<vmem>>, vector<4x768xf32>
    tpu.vector_store %arg3[%c0_13, %c0_14], %55 {strides = array<i32>} : memref<4x768xf32, #tpu.memory_space<vmem>>, vector<4x768xf32>,
    return
  }
  func.func @transform_0(%arg0: i32) -> (i32, i32) {
    %c0_i32 = arith.constant 0 : i32
    %c0_i32_0 = arith.constant 0 : i32
    %c0_i32_1 = arith.constant 0 : i32
    return %c0_i32, %c0_i32_0 : i32, i32
  }
  func.func @transform_1(%arg0: i32) -> (i32, i32) {
    %c0_i32 = arith.constant 0 : i32
    %c0_i32_0 = arith.constant 0 : i32
    return %arg0, %c0_i32 : i32, i32
  }
  func.func @transform_2(%arg0: i32) -> (i32, i32) {
    %c0_i32 = arith.constant 0 : i32
    %c0_i32_0 = arith.constant 0 : i32
    return %arg0, %c0_i32 : i32, i32
  }
}

</mosaic_0001>

<llo_original>
// kernel: tpu_custom_call.1
$region0: #{tpu_custom_call.1}
  #allocation0 [shape = 'u32[]', space=smem, size = 0x4, offset = 0x4, fixed_abs, tag = 'smem constant byte address 0x4 - core index']
  #allocation1 [shape = 'u32[72,128]{1,0:T(1,128)}', space=vmem, size = 0x9000, scoped, tag = 'internal scratch']
  %s0 = inlined_call_operand.hbm [shape: s32[3,768], index: 0, kind: input, shape index: {}]
  %s1 = inlined_call_operand.hbm [shape: f32[4,768], index: 1, kind: input, shape index: {}]
  %s2 = inlined_call_operand.hbm [shape: f32[4,768], index: 2, kind: output, shape index: {}]
  %s3 = sld [smem:[#allocation0]]
  $region26: #{tpu_custom_call.1} parent=0
    _
  %s5 = ssub.s32 1, %s3
  %s6 = scalar_select 0, %s5, %s3
  $region1: #{tpu_custom_call.1} parent=0
    #allocation2 [shape = 'u8[12288]{0}', space=vmem, size = 0x3000, scoped, tag = 'input window, operand 0, single buffered']
    #allocation3 [shape = 's32[1]{0}', space=sflag, size = 0x4, scoped, tag = 'scoped memory for tpu_custom_call.1']
    #allocation4 [shape = 's32[1]{0}', space=sflag, size = 0x4, scoped, tag = 'scoped memory for tpu_custom_call.1']
    #allocation5 [shape = 'u8[12288]{0}', space=vmem, size = 0x3000, scoped, tag = 'input window, operand 1, single buffered']
    #allocation6 [shape = 's32[1]{0}', space=sflag, size = 0x4, scoped, tag = 'scoped memory for tpu_custom_call.1']
    #allocation7 [shape = 'u8[12288]{0}', space=vmem, size = 0x3000, scoped, tag = 'output window, operand 0, single buffered']
    %7 = vsyncpa [#allocation3], 0
    %8 = vsyncpa [#allocation6], 0
    %9 = vsyncpa [#allocation4], 0
    // Predicated region
    $region2: #{tpu_custom_call.1} parent=1 // pred_check
      _
    $region3: #{tpu_custom_call.1} parent=1 // pred_check_branch
      %11 = sbr.rel (0) target = $region5
    $region4: #{tpu_custom_call.1} parent=1 // pred_region
      %13 = vsyncadd [#allocation3], 0
      %s15 = sshll.u32 %s0, 4
      %s16 = int_to_ptr.hbm [resolvable:$true] %s15
      %s17 = sshll.u32 [#allocation2], 4
      %s18 = int_to_ptr.vmem [resolvable:$true] %s17
      %20 = dma.hbm_to_vmem [thread:$0]  %s16, 384, %s18, [#allocation3]
    $region5: #{tpu_custom_call.1} parent=1 // pred_fallthru
      _
    // Predicated region
    $region6: #{tpu_custom_call.1} parent=1 // pred_check
      _
    $region7: #{tpu_custom_call.1} parent=1 // pred_check_branch
      %22 = sbr.rel (0) target = $region9
    $region8: #{tpu_custom_call.1} parent=1 // pred_region
      %24 = vsyncadd [#allocation6], 0
      %s26 = sshll.u32 %s1, 4
      %s27 = int_to_ptr.hbm [resolvable:$true] %s26
      %s28 = sshll.u32 [#allocation5], 4
      %s29 = int_to_ptr.vmem [resolvable:$true] %s28
      %31 = dma.hbm_to_vmem [thread:$0]  %s27, 384, %s29, [#allocation6]
    $region9: #{tpu_custom_call.1} parent=1 // pred_fallthru
      _
    // Predicated region
    $region10: #{tpu_custom_call.1} parent=1 // pred_check
      _
    $region11: #{tpu_custom_call.1} parent=1 // pred_check_branch
      %33 = sbr.rel (0) target = $region13
    $region12: #{tpu_custom_call.1} parent=1 // pred_region
      %35 = dma.done [#allocation3], 384
    $region13: #{tpu_custom_call.1} parent=1 // pred_fallthru
      _
    // Predicated region
    $region14: #{tpu_custom_call.1} parent=1 // pred_check
      _
    $region15: #{tpu_custom_call.1} parent=1 // pred_check_branch
      %37 = sbr.rel (0) target = $region17
    $region16: #{tpu_custom_call.1} parent=1 // pred_region
      %39 = dma.done [#allocation6], 384
    $region17: #{tpu_custom_call.1} parent=1 // pred_fallthru
      _
    %v40 = vld [vmem:[#allocation5] sm:$0xff]
    %v41 = vld [vmem:[#allocation5 + $0x8] sm:$0xff]
    %v42 = vld [vmem:[#allocation5 + $0x10] sm:$0xff]
    %v43 = vld [vmem:[#allocation2] ss:$4 sm:$0x3f]
    %s44 = scalar_lea.vmem [#allocation2], 1
    %v45 = vld [vmem:[%s44] ss:$4 sm:$0x3f]
    %s46 = scalar_lea.vmem [#allocation2], 2
    %v47 = vld [vmem:[%s46] ss:$4 sm:$0x3f]
    %51 = vst [vmem:[#allocation1] ss:$2 sm:$0xff] %v40
    %s52 = scalar_lea.vmem [#allocation1], 16
    %53 = vst [vmem:[%s52] ss:$2 sm:$0xff] %v41
    %s54 = scalar_lea.vmem [#allocation1], 32
    %55 = vst [vmem:[%s54] ss:$2 sm:$0xff] %v42
    %v56 = vld.sshfl [vmem:[#allocation1] sm:$0xff pattern:$0x75316420]
    %v57 = vld.sshfl [vmem:[#allocation1 + $0x8] sm:$0xff pattern:$0x75316420]
    %v58 = vld.sshfl [vmem:[#allocation1 + $0x10] sm:$0xff pattern:$0x75316420]
    %v59 = vld.sshfl [vmem:[#allocation1 + $0x18] sm:$0xff pattern:$0x75316420]
    %v60 = vld.sshfl [vmem:[#allocation1 + $0x20] sm:$0xff pattern:$0x75316420]
    %v61 = vld.sshfl [vmem:[#allocation1 + $0x28] sm:$0xff pattern:$0x75316420]
    %68 = vrot.lane.b32.xlu0 %v56, 1
    %v69 = vpop.permute.xlu0 %68
    %70 = vrot.lane.b32.xlu0 %v57, 1
    %v71 = vpop.permute.xlu0 %70
    %72 = vrot.lane.b32.xlu0 %v58, 1
    %v73 = vpop.permute.xlu0 %72
    %74 = vrot.lane.b32.xlu0 %v59, 1
    %v75 = vpop.permute.xlu0 %74
    %76 = vrot.lane.b32.xlu0 %v60, 1
    %v77 = vpop.permute.xlu0 %76
    %78 = vrot.lane.b32.xlu0 %v61, 1
    %v79 = vpop.permute.xlu0 %78
    %v80 = vlaneseq
    %v81 = vand.u32 %v80, 127
    %vm82 = vcmp.lt.s32.totalorder %v81, 1
    %v83 = vsel %vm82, %v77, %v79
    %v84 = vsel %vm82, %v75, %v77
    %v85 = vsel %vm82, %v73, %v75
    %v86 = vsel %vm82, %v71, %v73
    %v87 = vsel %vm82, %v69, %v71
    %v88 = vsel %vm82, %v79, %v69
    %vm89 = vcmp.ge.s32.totalorder %v43, 1
    %v90 = vsel %vm89, 1, 0
    %v91 = vperm.slane %v90, 0
    %v92 = vperm.slane %v90, 1
    %v93 = vperm.slane %v90, 2
    %v94 = vperm.slane %v90, 3
    %v95 = vperm.slane %v90, 4
    %v96 = vperm.slane %v90, 5
    %vm97 = vcmp.eq.s32.totalorder %v91, 1
    %vm98 = vcmp.eq.s32.totalorder %v92, 1
    %vm99 = vcmp.eq.s32.totalorder %v93, 1
    %vm100 = vcmp.eq.s32.totalorder %v94, 1
    %vm101 = vcmp.eq.s32.totalorder %v95, 1
    %vm102 = vcmp.eq.s32.totalorder %v96, 1
    %v103 = vsel %vm97, %v88, -inf
    %v104 = vsel %vm98, %v87, -inf
    %v105 = vsel %vm99, %v86, -inf
    %v106 = vsel %vm100, %v85, -inf
    %v107 = vsel %vm101, %v84, -inf
    %v108 = vsel %vm102, %v83, -inf
    %v115 = vrot.slane %v104, 4
    %v116 = vrot.slane %v106, 4
    %v117 = vrot.slane %v108, 4
    %vm118 = vcmask 1043456
    %v119 = vsel %vm118, %v103, %v115
    %v120 = vsel %vm118, %v105, %v116
    %v121 = vsel %vm118, %v107, %v117
    %v125 = vmax.f32 %v40, %v119
    %v126 = vmax.f32 %v41, %v120
    %v127 = vmax.f32 %v42, %v121
    %128 = vst [vmem:[#allocation1] ss:$2 sm:$0xff] %v40
    %s129 = scalar_lea.vmem [#allocation1], 16
    %130 = vst [vmem:[%s129] ss:$2 sm:$0xff] %v41
    %s131 = scalar_lea.vmem [#allocation1], 32
    %132 = vst [vmem:[%s131] ss:$2 sm:$0xff] %v42
    %v133 = vld.sshfl [vmem:[#allocation1] sm:$0xff pattern:$0x75316420]
    %v134 = vld.sshfl [vmem:[#allocation1 + $0x8] sm:$0xff pattern:$0x75316420]
    %v135 = vld.sshfl [vmem:[#allocation1 + $0x10] sm:$0xff pattern:$0x75316420]
    %v136 = vld.sshfl [vmem:[#allocation1 + $0x18] sm:$0xff pattern:$0x75316420]
    %v137 = vld.sshfl [vmem:[#allocation1 + $0x20] sm:$0xff pattern:$0x75316420]
    %v138 = vld.sshfl [vmem:[#allocation1 + $0x28] sm:$0xff pattern:$0x75316420]
    %145 = vrot.lane.b32.xlu0 %v133, 127
    %v146 = vpop.permute.xlu0 %145
    %147 = vrot.lane.b32.xlu0 %v134, 127
    %v148 = vpop.permute.xlu0 %147
    %149 = vrot.lane.b32.xlu0 %v135, 127
    %v150 = vpop.permute.xlu0 %149
    %151 = vrot.lane.b32.xlu0 %v136, 127
    %v152 = vpop.permute.xlu0 %151
    %153 = vrot.lane.b32.xlu0 %v137, 127
    %v154 = vpop.permute.xlu0 %153
    %155 = vrot.lane.b32.xlu0 %v138, 127
    %v156 = vpop.permute.xlu0 %155
    %vm157 = vcmp.lt.s32.totalorder %v81, 127
    %v158 = vsel %vm157, %v154, %v156
    %v159 = vsel %vm157, %v152, %v154
    %v160 = vsel %vm157, %v150, %v152
    %v161 = vsel %vm157, %v148, %v150
    %v162 = vsel %vm157, %v146, %v148
    %v163 = vsel %vm157, %v156, %v146
    %vm164 = vcmp.le.s32.totalorder %v43, 14
    %v165 = vsel %vm164, 1, 0
    %v166 = vperm.slane %v165, 0
    %v167 = vperm.slane %v165, 1
    %v168 = vperm.slane %v165, 2
    %v169 = vperm.slane %v165, 3
    %v170 = vperm.slane %v165, 4
    %v171 = vperm.slane %v165, 5
    %vm172 = vcmp.eq.s32.totalorder %v166, 1
    %vm173 = vcmp.eq.s32.totalorder %v167, 1
    %vm174 = vcmp.eq.s32.totalorder %v168, 1
    %vm175 = vcmp.eq.s32.totalorder %v169, 1
    %vm176 = vcmp.eq.s32.totalorder %v170, 1
    %vm177 = vcmp.eq.s32.totalorder %v171, 1
    %v178 = vsel %vm172, %v162, -inf
    %v179 = vsel %vm173, %v161, -inf
    %v180 = vsel %vm174, %v160, -inf
    %v181 = vsel %vm175, %v159, -inf
    %v182 = vsel %vm176, %v158, -inf
    %v183 = vsel %vm177, %v163, -inf
    %v190 = vrot.slane %v179, 4
    %v191 = vrot.slane %v181, 4
    %v192 = vrot.slane %v183, 4
    %v193 = vsel %vm118, %v178, %v190
    %v194 = vsel %vm118, %v180, %v191
    %v195 = vsel %vm118, %v182, %v192
    %v199 = vmax.f32 %v125, %v193
    %v200 = vmax.f32 %v126, %v194
    %v201 = vmax.f32 %v127, %v195
    %205 = vst [vmem:[#allocation1] ss:$2 sm:$0xff] %v199
    %s206 = scalar_lea.vmem [#allocation1], 16
    %207 = vst [vmem:[%s206] ss:$2 sm:$0xff] %v200
    %s208 = scalar_lea.vmem [#allocation1], 32
    %209 = vst [vmem:[%s208] ss:$2 sm:$0xff] %v201
    %v210 = vld.sshfl [vmem:[#allocation1] sm:$0xff pattern:$0x75316420]
    %v211 = vld.sshfl [vmem:[#allocation1 + $0x8] sm:$0xff pattern:$0x75316420]
    %v212 = vld.sshfl [vmem:[#allocation1 + $0x10] sm:$0xff pattern:$0x75316420]
    %v213 = vld.sshfl [vmem:[#allocation1 + $0x18] sm:$0xff pattern:$0x75316420]
    %v214 = vld.sshfl [vmem:[#allocation1 + $0x20] sm:$0xff pattern:$0x75316420]
    %v215 = vld.sshfl [vmem:[#allocation1 + $0x28] sm:$0xff pattern:$0x75316420]
    %222 = vrot.lane.b32.xlu0 %v210, 16
    %v223 = vpop.permute.xlu0 %222
    %224 = vrot.lane.b32.xlu0 %v211, 16
    %v225 = vpop.permute.xlu0 %224
    %226 = vrot.lane.b32.xlu0 %v212, 16
    %v227 = vpop.permute.xlu0 %226
    %228 = vrot.lane.b32.xlu0 %v213, 16
    %v229 = vpop.permute.xlu0 %228
    %230 = vrot.lane.b32.xlu0 %v214, 16
    %v231 = vpop.permute.xlu0 %230
    %232 = vrot.lane.b32.xlu0 %v215, 16
    %v233 = vpop.permute.xlu0 %232
    %vm234 = vcmp.lt.s32.totalorder %v81, 16
    %v235 = vsel %vm234, %v231, %v233
    %v236 = vsel %vm234, %v229, %v231
    %v237 = vsel %vm234, %v227, %v229
    %v238 = vsel %vm234, %v225, %v227
    %v239 = vsel %vm234, %v223, %v225
    %v240 = vsel %vm234, %v233, %v223
    %vm241 = vcmp.ge.s32.totalorder %v45, 1
    %v242 = vsel %vm241, 1, 0
    %v243 = vperm.slane %v242, 0
    %v244 = vperm.slane %v242, 1
    %v245 = vperm.slane %v242, 2
    %v246 = vperm.slane %v242, 3
    %v247 = vperm.slane %v242, 4
    %v248 = vperm.slane %v242, 5
    %vm249 = vcmp.eq.s32.totalorder %v243, 1
    %vm250 = vcmp.eq.s32.totalorder %v244, 1
    %vm251 = vcmp.eq.s32.totalorder %v245, 1
    %vm252 = vcmp.eq.s32.totalorder %v246, 1
    %vm253 = vcmp.eq.s32.totalorder %v247, 1
    %vm254 = vcmp.eq.s32.totalorder %v248, 1
    %v255 = vsel %vm249, %v240, -inf
    %v256 = vsel %vm250, %v239, -inf
    %v257 = vsel %vm251, %v238, -inf
    %v258 = vsel %vm252, %v237, -inf
    %v259 = vsel %vm253, %v236, -inf
    %v260 = vsel %vm254, %v235, -inf
    %v267 = vrot.slane %v256, 4
    %v268 = vrot.slane %v258, 4
    %v269 = vrot.slane %v260, 4
    %v270 = vsel %vm118, %v255, %v267
    %v271 = vsel %vm118, %v257, %v268
    %v272 = vsel %vm118, %v259, %v269
    %v276 = vmax.f32 %v199, %v270
    %v277 = vmax.f32 %v200, %v271
    %v278 = vmax.f32 %v201, %v272
    %279 = vst [vmem:[#allocation1] ss:$2 sm:$0xff] %v199
    %s280 = scalar_lea.vmem [#allocation1], 16
    %281 = vst [vmem:[%s280] ss:$2 sm:$0xff] %v200
    %s282 = scalar_lea.vmem [#allocation1], 32
    %283 = vst [vmem:[%s282] ss:$2 sm:$0xff] %v201
    %v284 = vld.sshfl [vmem:[#allocation1] sm:$0xff pattern:$0x75316420]
    %v285 = vld.sshfl [vmem:[#allocation1 + $0x8] sm:$0xff pattern:$0x75316420]
    %v286 = vld.sshfl [vmem:[#allocation1 + $0x10] sm:$0xff pattern:$0x75316420]
    %v287 = vld.sshfl [vmem:[#allocation1 + $0x18] sm:$0xff pattern:$0x75316420]
    %v288 = vld.sshfl [vmem:[#allocation1 + $0x20] sm:$0xff pattern:$0x75316420]
    %v289 = vld.sshfl [vmem:[#allocation1 + $0x28] sm:$0xff pattern:$0x75316420]
    %296 = vrot.lane.b32.xlu0 %v284, 112
    %v297 = vpop.permute.xlu0 %296
    %298 = vrot.lane.b32.xlu0 %v285, 112
    %v299 = vpop.permute.xlu0 %298
    %300 = vrot.lane.b32.xlu0 %v286, 112
    %v301 = vpop.permute.xlu0 %300
    %302 = vrot.lane.b32.xlu0 %v287, 112
    %v303 = vpop.permute.xlu0 %302
    %304 = vrot.lane.b32.xlu0 %v288, 112
    %v305 = vpop.permute.xlu0 %304
    %306 = vrot.lane.b32.xlu0 %v289, 112
    %v307 = vpop.permute.xlu0 %306
    %vm308 = vcmp.lt.s32.totalorder %v81, 112
    %v309 = vsel %vm308, %v305, %v307
    %v310 = vsel %vm308, %v303, %v305
    %v311 = vsel %vm308, %v301, %v303
    %v312 = vsel %vm308, %v299, %v301
    %v313 = vsel %vm308, %v297, %v299
    %v314 = vsel %vm308, %v307, %v297
    %vm315 = vcmp.le.s32.totalorder %v45, 6
    %v316 = vsel %vm315, 1, 0
    %v317 = vperm.slane %v316, 0
    %v318 = vperm.slane %v316, 1
    %v319 = vperm.slane %v316, 2
    %v320 = vperm.slane %v316, 3
    %v321 = vperm.slane %v316, 4
    %v322 = vperm.slane %v316, 5
    %vm323 = vcmp.eq.s32.totalorder %v317, 1
    %vm324 = vcmp.eq.s32.totalorder %v318, 1
    %vm325 = vcmp.eq.s32.totalorder %v319, 1
    %vm326 = vcmp.eq.s32.totalorder %v320, 1
    %vm327 = vcmp.eq.s32.totalorder %v321, 1
    %vm328 = vcmp.eq.s32.totalorder %v322, 1
    %v329 = vsel %vm323, %v313, -inf
    %v330 = vsel %vm324, %v312, -inf
    %v331 = vsel %vm325, %v311, -inf
    %v332 = vsel %vm326, %v310, -inf
    %v333 = vsel %vm327, %v309, -inf
    %v334 = vsel %vm328, %v314, -inf
    %v341 = vrot.slane %v330, 4
    %v342 = vrot.slane %v332, 4
    %v343 = vrot.slane %v334, 4
    %v344 = vsel %vm118, %v329, %v341
    %v345 = vsel %vm118, %v331, %v342
    %v346 = vsel %vm118, %v333, %v343
    %v350 = vmax.f32 %v276, %v344
    %v351 = vmax.f32 %v277, %v345
    %v352 = vmax.f32 %v278, %v346
    %356 = vst [vmem:[#allocation1] ss:$2 sm:$0xff] %v350
    %s357 = scalar_lea.vmem [#allocation1], 16
    %358 = vst [vmem:[%s357] ss:$2 sm:$0xff] %v351
    %s359 = scalar_lea.vmem [#allocation1], 32
    %360 = vst [vmem:[%s359] ss:$2 sm:$0xff] %v352
    %v361 = vld.sshfl [vmem:[#allocation1] sm:$0xff pattern:$0x75316420]
    %v362 = vld.sshfl [vmem:[#allocation1 + $0x8] sm:$0xff pattern:$0x75316420]
    %v363 = vld.sshfl [vmem:[#allocation1 + $0x10] sm:$0xff pattern:$0x75316420]
    %v364 = vld.sshfl [vmem:[#allocation1 + $0x18] sm:$0xff pattern:$0x75316420]
    %v365 = vld.sshfl [vmem:[#allocation1 + $0x20] sm:$0xff pattern:$0x75316420]
    %v366 = vld.sshfl [vmem:[#allocation1 + $0x28] sm:$0xff pattern:$0x75316420]
    %vm373 = vcmp.ge.s32.totalorder %v47, 1
    %v374 = vsel %vm373, 1, 0
    %v375 = vperm.slane %v374, 0
    %v376 = vperm.slane %v374, 1
    %v377 = vperm.slane %v374, 2
    %v378 = vperm.slane %v374, 3
    %v379 = vperm.slane %v374, 4
    %v380 = vperm.slane %v374, 5
    %vm381 = vcmp.eq.s32.totalorder %v375, 1
    %vm382 = vcmp.eq.s32.totalorder %v376, 1
    %vm383 = vcmp.eq.s32.totalorder %v377, 1
    %vm384 = vcmp.eq.s32.totalorder %v378, 1
    %vm385 = vcmp.eq.s32.totalorder %v379, 1
    %vm386 = vcmp.eq.s32.totalorder %v380, 1
    %v387 = vsel %vm381, %v366, -inf
    %v388 = vsel %vm382, %v361, -inf
    %v389 = vsel %vm383, %v362, -inf
    %v390 = vsel %vm384, %v363, -inf
    %v391 = vsel %vm385, %v364, -inf
    %v392 = vsel %vm386, %v365, -inf
    %v399 = vrot.slane %v388, 4
    %v400 = vrot.slane %v390, 4
    %v401 = vrot.slane %v392, 4
    %v402 = vsel %vm118, %v387, %v399
    %v403 = vsel %vm118, %v389, %v400
    %v404 = vsel %vm118, %v391, %v401
    %v408 = vmax.f32 %v350, %v402
    %v409 = vmax.f32 %v351, %v403
    %v410 = vmax.f32 %v352, %v404
    %411 = vst [vmem:[#allocation1] ss:$2 sm:$0xff] %v350
    %s412 = scalar_lea.vmem [#allocation1], 16
    %413 = vst [vmem:[%s412] ss:$2 sm:$0xff] %v351
    %s414 = scalar_lea.vmem [#allocation1], 32
    %415 = vst [vmem:[%s414] ss:$2 sm:$0xff] %v352
    %v416 = vld.sshfl [vmem:[#allocation1] sm:$0xff pattern:$0x75316420]
    %v417 = vld.sshfl [vmem:[#allocation1 + $0x8] sm:$0xff pattern:$0x75316420]
    %v418 = vld.sshfl [vmem:[#allocation1 + $0x10] sm:$0xff pattern:$0x75316420]
    %v419 = vld.sshfl [vmem:[#allocation1 + $0x18] sm:$0xff pattern:$0x75316420]
    %v420 = vld.sshfl [vmem:[#allocation1 + $0x20] sm:$0xff pattern:$0x75316420]
    %v421 = vld.sshfl [vmem:[#allocation1 + $0x28] sm:$0xff pattern:$0x75316420]
    %vm428 = vcmp.le.s32.totalorder %v47, 4
    %v429 = vsel %vm428, 1, 0
    %v430 = vperm.slane %v429, 0
    %v431 = vperm.slane %v429, 1
    %v432 = vperm.slane %v429, 2
    %v433 = vperm.slane %v429, 3
    %v434 = vperm.slane %v429, 4
    %v435 = vperm.slane %v429, 5
    %vm436 = vcmp.eq.s32.totalorder %v430, 1
    %vm437 = vcmp.eq.s32.totalorder %v431, 1
    %vm438 = vcmp.eq.s32.totalorder %v432, 1
    %vm439 = vcmp.eq.s32.totalorder %v433, 1
    %vm440 = vcmp.eq.s32.totalorder %v434, 1
    %vm441 = vcmp.eq.s32.totalorder %v435, 1
    %v442 = vsel %vm436, %v417, -inf
    %v443 = vsel %vm437, %v418, -inf
    %v444 = vsel %vm438, %v419, -inf
    %v445 = vsel %vm439, %v420, -inf
    %v446 = vsel %vm440, %v421, -inf
    %v447 = vsel %vm441, %v416, -inf
    %v454 = vrot.slane %v443, 4
    %v455 = vrot.slane %v445, 4
    %v456 = vrot.slane %v447, 4
    %v457 = vsel %vm118, %v442, %v454
    %v458 = vsel %vm118, %v444, %v455
    %v459 = vsel %vm118, %v446, %v456
    %v463 = vmax.f32 %v408, %v457
    %v464 = vmax.f32 %v409, %v458
    %v465 = vmax.f32 %v410, %v459
    %vm466 = vcmp.eq.f32.partialorder %v40, %v463
    %vm467 = vcmp.eq.f32.partialorder %v41, %v464
    %vm468 = vcmp.eq.f32.partialorder %v42, %v465
    %v469 = vsel %vm466, 1, 0
    %v470 = vsel %vm467, 1, 0
    %v471 = vsel %vm468, 1, 0
    %v472 = vcvt.s32.f32 %v469
    %v473 = vcvt.s32.f32 %v470
    %v474 = vcvt.s32.f32 %v471
    %v475 = vmul.f32 %v40, %v472
    %v476 = vmul.f32 %v41, %v473
    %v477 = vmul.f32 %v42, %v474
    %478 = vst [vmem:[#allocation7] sm:$0xff] %v475
    %479 = vst [vmem:[#allocation7 + $0x8] sm:$0xff] %v476
    %480 = vst [vmem:[#allocation7 + $0x10] sm:$0xff] %v477
    // Predicated region
    $region18: #{tpu_custom_call.1} parent=1 // pred_check
      _
    $region19: #{tpu_custom_call.1} parent=1 // pred_check_branch
      %482 = sbr.rel (0) target = $region21
    $region20: #{tpu_custom_call.1} parent=1 // pred_region
      %484 = vsyncadd [#allocation4], 0
      %s486 = sshll.u32 [#allocation7], 4
      %s487 = int_to_ptr.vmem [resolvable:$true] %s486
      %s488 = sshll.u32 %s2, 4
      %s489 = int_to_ptr.hbm [resolvable:$true] %s488
      %491 = dma.vmem_to_hbm [thread:$0]  %s487, 384, %s489, [#allocation4]
    $region21: #{tpu_custom_call.1} parent=1 // pred_fallthru
      _
    // Predicated region
    $region22: #{tpu_custom_call.1} parent=1 // pred_check
      _
    $region23: #{tpu_custom_call.1} parent=1 // pred_check_branch
      %493 = sbr.rel (0) target = $region25
    $region24: #{tpu_custom_call.1} parent=1 // pred_region
      %495 = dma.done [#allocation4], 384
    $region25: #{tpu_custom_call.1} parent=1 // pred_fallthru
      _
    %496 = vsyncpa [#allocation3], 1
    %497 = vsyncpa [#allocation6], 1
    %498 = vsyncpa [#allocation4], 1

</llo_original>
